<compile_context>
chip_gen: v7x
topology: tpu7x:2x2x1
jax: 0.10.0
libtpu: 0.0.40
codegen_flags: <defaults>
</compile_context>

<pallas_src>
import jax
import jax.numpy as jnp
from jax.experimental import pallas as pl
from jax.experimental.pallas import tpu as pltpu


def _round_up(x, m):
    return (x + m - 1) // m * m


def bow_mlp_kernel(x_ref, w1_ref, b1_ref, w2_ref, b2_ref, w3_ref, b3_ref,
                   out_ref):
    # x_ref: (B_TILE, D) bf16 pooled sentence embeddings.
    x = x_ref[...]

    h1 = jnp.dot(x, w1_ref[...], preferred_element_type=jnp.float32)
    h1 = jnp.maximum(h1 + b1_ref[...], 0.0).astype(jnp.bfloat16)       # ReLU

    h2 = jnp.dot(h1, w2_ref[...], preferred_element_type=jnp.float32)
    h2 = jnp.maximum(h2 + b2_ref[...], 0.0).astype(jnp.bfloat16)       # ReLU

    logits = jnp.dot(h2, w3_ref[...], preferred_element_type=jnp.float32)
    logits = logits + b3_ref[...]
    # sigmoid: exp + reciprocal both go to the EUP slot (approx=True).
    sig = pl.reciprocal(1.0 + jnp.exp(-logits), approx=True)
    out_ref[...] = sig.astype(out_ref.dtype)                           # bf16 store


def bow_classifier_forward(indices, embedding, w1, b1, w2, b2, w3, b3,
                           *, b_tile=512):
    """indices: (B, S) int32; returns (B, num_labels) float32."""
    B, _ = indices.shape
    D = embedding.shape[1]
    L = w3.shape[1]

    # Glue: embedding gather (bf16) + mean-pool (f32 accumulation) in XLA; the
    # kernel sees only (B, D). Keeping the (B, S, D) gathered intermediate in
    # bf16 halves the dominant pre-kernel HBM stream.
    # TODO(synk): for production vocab/seq sizes, fuse the gather in-kernel via
    # PrefetchScalarGridSpec(num_scalar_prefetch=1) + row DMA from an HBM table
    # (mind the 64 MiB physical / 32 MiB scoped VMEM budget on v7x).
    emb_bf16 = embedding.astype(jnp.bfloat16)
    pooled = jnp.mean(emb_bf16[indices], axis=1, dtype=jnp.float32)    # (B, D)

    # --- batch-tile selection ---------------------------------------------
    # 16 = bf16 sublane pack (8 is the hard BlockSpec minimum); never pad the
    # batch past round_up(B, 16).
    b_eff = _round_up(max(B, 1), 16)
    tile = min(b_tile, b_eff)
    # Keep >= 2 grid steps when the batch allows so both v7x TensorCores get
    # work under dimension_semantics=("parallel",). On 1-TC chips this only
    # costs one extra ~0.35us grid step.
    if b_eff > 16 and pl.cdiv(b_eff, tile) < 2:
        tile = _round_up(pl.cdiv(b_eff, 2), 16)
    b_pad = _round_up(b_eff, tile)

    # Lane-dense output: pad num_labels up to 128 lanes (unmasked vst),
    # sliced back after the kernel. Hidden dims are left unpadded on purpose.
    l_pad = _round_up(L, 128)

    x = jnp.pad(pooled, ((0, b_pad - B), (0, 0))).astype(jnp.bfloat16)
    w1b = w1.astype(jnp.bfloat16)
    w2b = w2.astype(jnp.bfloat16)
    w3b = jnp.pad(w3, ((0, 0), (0, l_pad - L))).astype(jnp.bfloat16)
    b1f = b1.astype(jnp.float32)
    b2f = b2.astype(jnp.float32)
    b3f = jnp.pad(b3, ((0, 0), (0, l_pad - L))).astype(jnp.float32)

    def resident(shape):  # full-block, constant index_map -> stays VMEM-resident
        return pl.BlockSpec(shape, lambda i: (0, 0))

    out = pl.pallas_call(
        bow_mlp_kernel,
        out_shape=jax.ShapeDtypeStruct((b_pad, l_pad), jnp.bfloat16),
        grid=(b_pad // tile,),
        in_specs=[
            pl.BlockSpec((tile, D), lambda i: (i, 0)),     # pipelined activations
            resident(w1b.shape), resident(b1f.shape),
            resident(w2b.shape), resident(b2f.shape),
            resident(w3b.shape), resident(b3f.shape),
        ],
        out_specs=pl.BlockSpec((tile, l_pad), lambda i: (i, 0)),
        compiler_params=pltpu.CompilerParams(
            dimension_semantics=("parallel",)),
    )(x, w1b, b1f, w2b, b2f, w3b, b3f)

    # Cast the small (B, L) slice back to f32 for the caller.
    return out[:B, :L].astype(jnp.float32)


def reference_forward(indices, embedding, w1, b1, w2, b2, w3, b3):
    x = embedding[indices].mean(axis=1)
    x = jnp.maximum(x @ w1 + b1, 0.0)
    x = jnp.maximum(x @ w2 + b2, 0.0)
    return jax.nn.sigmoid(x @ w3 + b3)


if __name__ == "__main__":
    # Small, deterministic shapes consistent with the module's forward().
    vocab_size = 100
    embedding_dim = 32
    hidden1 = 64
    hidden2 = 32
    num_labels = 8
    batchsize = 8
    seq_len = 8

    key = jax.random.PRNGKey(0)
    k_idx, k_emb, k_w1, k_b1, k_w2, k_b2, k_w3, k_b3 = jax.random.split(key, 8)

    # Deterministic synthetic parameters (no checkpoint loading).
    # Linear weights stored transposed vs. PyTorch: (in, out), so y = x @ W + b.
    embedding = jax.random.normal(k_emb, (vocab_size, embedding_dim),
                                  jnp.float32)
    w1 = jax.random.normal(k_w1, (embedding_dim, hidden1), jnp.float32) * 0.1
    b1 = jax.random.normal(k_b1, (1, hidden1), jnp.float32) * 0.1
    w2 = jax.random.normal(k_w2, (hidden1, hidden2), jnp.float32) * 0.1
    b2 = jax.random.normal(k_b2, (1, hidden2), jnp.float32) * 0.1
    w3 = jax.random.normal(k_w3, (hidden2, num_labels), jnp.float32) * 0.1
    b3 = jax.random.normal(k_b3, (1, num_labels), jnp.float32) * 0.1

    indices = jax.random.randint(k_idx, (batchsize, seq_len), 0, vocab_size,
                                 dtype=jnp.int32)

    out = bow_classifier_forward(indices, embedding, w1, b1, w2, b2, w3, b3)
    out = jax.block_until_ready(out)

    ref = reference_forward(indices, embedding, w1, b1, w2, b2, w3, b3)
    assert out.shape == (batchsize, num_labels)
    # bf16 operands / bf16 output store (f32 MXU accumulation) vs. pure-f32
    # reference -> relaxed tolerance.
    assert jnp.allclose(out, ref, atol=2e-2, rtol=2e-2), "mismatch vs reference"

    print("KERNEL_OK")
</pallas_src>

<mosaic_0001>
module attributes {stable_mosaic.version = 11 : i64} {
  func.func @bow_mlp_kernel(%arg0: i32, %arg1: memref<16x32xbf16, #tpu.memory_space<vmem>>, %arg2: memref<32x64xbf16, #tpu.memory_space<vmem>>, %arg3: memref<1x64xf32, #tpu.memory_space<vmem>>, %arg4: memref<64x32xbf16, #tpu.memory_space<vmem>>, %arg5: memref<1x32xf32, #tpu.memory_space<vmem>>, %arg6: memref<32x128xbf16, #tpu.memory_space<vmem>>, %arg7: memref<1x128xf32, #tpu.memory_space<vmem>>, %arg8: memref<16x128xbf16, #tpu.memory_space<vmem>>) attributes {dimension_semantics = [#tpu.dimension_semantics<parallel>], iteration_bounds = array<i64: 1>, scalar_prefetch = 0 : i64, scratch_operands = 0 : i64, tpu.core_type = #tpu.core_type<tc>, window_params = [{transform_indices = @transform_0, window_bounds = array<i64: 16, 32>}, {pipeline_mode = #tpu.pipeline_mode<synchronous>, transform_indices = @transform_1, window_bounds = array<i64: 32, 64>}, {pipeline_mode = #tpu.pipeline_mode<synchronous>, transform_indices = @transform_2, window_bounds = array<i64: 1, 64>}, {pipeline_mode = #tpu.pipeline_mode<synchronous>, transform_indices = @transform_3, window_bounds = array<i64: 64, 32>}, {pipeline_mode = #tpu.pipeline_mode<synchronous>, transform_indices = @transform_4, window_bounds = array<i64: 1, 32>}, {pipeline_mode = #tpu.pipeline_mode<synchronous>, transform_indices = @transform_5, window_bounds = array<i64: 32, 128>}, {pipeline_mode = #tpu.pipeline_mode<synchronous>, transform_indices = @transform_6, window_bounds = array<i64: 1, 128>}, {transform_indices = @transform_7, window_bounds = array<i64: 16, 128>}]} {
    %c0 = arith.constant 0 : index
    %c0_0 = arith.constant 0 : index
    %0 = vector.load %arg1[%c0, %c0_0] : memref<16x32xbf16, #tpu.memory_space<vmem>>, vector<16x32xbf16>
    %c0_1 = arith.constant 0 : index
    %c0_2 = arith.constant 0 : index
    %1 = vector.load %arg2[%c0_1, %c0_2] : memref<32x64xbf16, #tpu.memory_space<vmem>>, vector<32x64xbf16>
    %cst = arith.constant dense<0.000000e+00> : vector<16x64xf32>
    %2 = tpu.matmul %0, %1, %cst {dimension_numbers = #tpu.dot_dimension_numbers<[1], [0], [0], [1], [0, 0, 1, 1], [], []>} : vector<16x32xbf16>, vector<32x64xbf16>, vector<16x64xf32> -> vector<16x64xf32>
    %c0_3 = arith.constant 0 : index
    %c0_4 = arith.constant 0 : index
    %3 = vector.load %arg3[%c0_3, %c0_4] : memref<1x64xf32, #tpu.memory_space<vmem>>, vector<1x64xf32>
    %4 = vector.broadcast %3 : vector<1x64xf32> to vector<16x64xf32>
    %5 = arith.addf %2, %4 : vector<16x64xf32>
    %cst_5 = arith.constant 0.000000e+00 : f32
    %6 = vector.broadcast %cst_5 : f32 to vector<16x64xf32>
    %7 = arith.maximumf %5, %6 : vector<16x64xf32>
    %8 = arith.truncf %7 : vector<16x64xf32> to vector<16x64xbf16>
    %c0_6 = arith.constant 0 : index
    %c0_7 = arith.constant 0 : index
    %9 = vector.load %arg4[%c0_6, %c0_7] : memref<64x32xbf16, #tpu.memory_space<vmem>>, vector<64x32xbf16>
    %cst_8 = arith.constant dense<0.000000e+00> : vector<16x32xf32>
    %10 = tpu.matmul %8, %9, %cst_8 {dimension_numbers = #tpu.dot_dimension_numbers<[1], [0], [0], [1], [0, 0, 1, 1], [], []>} : vector<16x64xbf16>, vector<64x32xbf16>, vector<16x32xf32> -> vector<16x32xf32>
    %c0_9 = arith.constant 0 : index
    %c0_10 = arith.constant 0 : index
    %11 = vector.load %arg5[%c0_9, %c0_10] : memref<1x32xf32, #tpu.memory_space<vmem>>, vector<1x32xf32>
    %12 = vector.broadcast %11 : vector<1x32xf32> to vector<16x32xf32>
    %13 = arith.addf %10, %12 : vector<16x32xf32>
    %cst_11 = arith.constant 0.000000e+00 : f32
    %14 = vector.broadcast %cst_11 : f32 to vector<16x32xf32>
    %15 = arith.maximumf %13, %14 : vector<16x32xf32>
    %16 = arith.truncf %15 : vector<16x32xf32> to vector<16x32xbf16>
    %c0_12 = arith.constant 0 : index
    %c0_13 = arith.constant 0 : index
    %17 = vector.load %arg6[%c0_12, %c0_13] : memref<32x128xbf16, #tpu.memory_space<vmem>>, vector<32x128xbf16>
    %cst_14 = arith.constant dense<0.000000e+00> : vector<16x128xf32>
    %18 = tpu.matmul %16, %17, %cst_14 {dimension_numbers = #tpu.dot_dimension_numbers<[1], [0], [0], [1], [0, 0, 1, 1], [], []>} : vector<16x32xbf16>, vector<32x128xbf16>, vector<16x128xf32> -> vector<16x128xf32>
    %c0_15 = arith.constant 0 : index
    %c0_16 = arith.constant 0 : index
    %19 = vector.load %arg7[%c0_15, %c0_16] : memref<1x128xf32, #tpu.memory_space<vmem>>, vector<1x128xf32>
    %20 = vector.broadcast %19 : vector<1x128xf32> to vector<16x128xf32>
    %21 = arith.addf %18, %20 : vector<16x128xf32>
    %cst_17 = arith.constant 0.000000e+00 : f32
    %22 = vector.broadcast %cst_17 : f32 to vector<16x128xf32>
    %23 = arith.subf %22, %21 : vector<16x128xf32>
    %24 = math.exp %23 : vector<16x128xf32>
    %cst_18 = arith.constant 1.000000e+00 : f32
    %25 = vector.broadcast %cst_18 : f32 to vector<16x128xf32>
    %26 = arith.addf %25, %24 : vector<16x128xf32>
    %27 = tpu.reciprocal %26 {approx = true} : vector<16x128xf32> -> vector<16x128xf32>
    %28 = arith.truncf %27 : vector<16x128xf32> to vector<16x128xbf16>
    %c0_19 = arith.constant 0 : index
    %c0_20 = arith.constant 0 : index
    %29 = vector.load %arg8[%c0_19, %c0_20] : memref<16x128xbf16, #tpu.memory_space<vmem>>, vector<16x128xbf16>
    tpu.vector_store %arg8[%c0_19, %c0_20], %28 {strides = array<i32>} : memref<16x128xbf16, #tpu.memory_space<vmem>>, vector<16x128xbf16>,
    return
  }
  func.func @transform_0(%arg0: i32) -> (i32, i32) {
    %c0_i32 = arith.constant 0 : i32
    %c0_i32_0 = arith.constant 0 : i32
    return %arg0, %c0_i32 : i32, i32
  }
  func.func @transform_1(%arg0: i32) -> (i32, i32) {
    %c0_i32 = arith.constant 0 : i32
    %c0_i32_0 = arith.constant 0 : i32
    %c0_i32_1 = arith.constant 0 : i32
    return %c0_i32, %c0_i32_0 : i32, i32
  }
  func.func @transform_2(%arg0: i32) -> (i32, i32) {
    %c0_i32 = arith.constant 0 : i32
    %c0_i32_0 = arith.constant 0 : i32
    %c0_i32_1 = arith.constant 0 : i32
    return %c0_i32, %c0_i32_0 : i32, i32
  }
  func.func @transform_3(%arg0: i32) -> (i32, i32) {
    %c0_i32 = arith.constant 0 : i32
    %c0_i32_0 = arith.constant 0 : i32
    %c0_i32_1 = arith.constant 0 : i32
    return %c0_i32, %c0_i32_0 : i32, i32
  }
  func.func @transform_4(%arg0: i32) -> (i32, i32) {
    %c0_i32 = arith.constant 0 : i32
    %c0_i32_0 = arith.constant 0 : i32
    %c0_i32_1 = arith.constant 0 : i32
    return %c0_i32, %c0_i32_0 : i32, i32
  }
  func.func @transform_5(%arg0: i32) -> (i32, i32) {
    %c0_i32 = arith.constant 0 : i32
    %c0_i32_0 = arith.constant 0 : i32
    %c0_i32_1 = arith.constant 0 : i32
    return %c0_i32, %c0_i32_0 : i32, i32
  }
  func.func @transform_6(%arg0: i32) -> (i32, i32) {
    %c0_i32 = arith.constant 0 : i32
    %c0_i32_0 = arith.constant 0 : i32
    %c0_i32_1 = arith.constant 0 : i32
    return %c0_i32, %c0_i32_0 : i32, i32
  }
  func.func @transform_7(%arg0: i32) -> (i32, i32) {
    %c0_i32 = arith.constant 0 : i32
    %c0_i32_0 = arith.constant 0 : i32
    return %arg0, %c0_i32 : i32, i32
  }
}

</mosaic_0001>

<llo_original>
// kernel: tpu_custom_call.1
$region0: #{tpu_custom_call.1}
  #allocation0 [shape = 'u32[]', space=smem, size = 0x4, offset = 0x4, fixed_abs, tag = 'smem constant byte address 0x4 - core index']
  #allocation1 [shape = 'u32[144,128]{1,0:T(1,128)}', space=vmem, size = 0x12000, scoped, tag = 'internal scratch']
  %s0 = inlined_call_operand.vmem [shape: bf16[16,32], index: 0, kind: input, shape index: {}]
  %s1 = inlined_call_operand.vmem [shape: bf16[32,64], index: 1, kind: input, shape index: {}]
  %s2 = inlined_call_operand.vmem [shape: f32[1,64], index: 2, kind: input, shape index: {}]
  %s3 = inlined_call_operand.vmem [shape: bf16[64,32], index: 3, kind: input, shape index: {}]
  %s4 = inlined_call_operand.vmem [shape: f32[1,32], index: 4, kind: input, shape index: {}]
  %s5 = inlined_call_operand.vmem [shape: bf16[32,128], index: 5, kind: input, shape index: {}]
  %s6 = inlined_call_operand.vmem [shape: f32[1,128], index: 6, kind: input, shape index: {}]
  %s7 = inlined_call_operand.hbm [shape: bf16[16,128], index: 7, kind: output, shape index: {}]
  %s8 = sld [smem:[#allocation0]]
  $region38: #{tpu_custom_call.1} parent=0
    _
  %s10 = ssub.s32 1, %s8
  %s11 = scalar_select 0, %s10, %s8
  $region1: #{tpu_custom_call.1} parent=0
    #allocation2 [shape = 'u8[4096]{0}', space=vmem, size = 0x1000, scoped, tag = 'output window, operand 0, single buffered']
    #allocation3 [shape = 's32[1]{0}', space=sflag, size = 0x4, scoped, tag = 'scoped memory for tpu_custom_call.1']
    %12 = vsyncpa [#allocation3], 0
    // Predicated region
    $region2: #{tpu_custom_call.1} parent=1 // pred_check
      _
    $region3: #{tpu_custom_call.1} parent=1 // pred_check_branch
      %14 = sbr.rel (0) target = $region5
    $region4: #{tpu_custom_call.1} parent=1 // pred_region
      _
    $region5: #{tpu_custom_call.1} parent=1 // pred_fallthru
      _
    // Predicated region
    $region6: #{tpu_custom_call.1} parent=1 // pred_check
      _
    $region7: #{tpu_custom_call.1} parent=1 // pred_check_branch
      %16 = sbr.rel (0) target = $region9
    $region8: #{tpu_custom_call.1} parent=1 // pred_region
      _
    $region9: #{tpu_custom_call.1} parent=1 // pred_fallthru
      _
    // Predicated region
    $region10: #{tpu_custom_call.1} parent=1 // pred_check
      _
    $region11: #{tpu_custom_call.1} parent=1 // pred_check_branch
      %18 = sbr.rel (0) target = $region13
    $region12: #{tpu_custom_call.1} parent=1 // pred_region
      _
    $region13: #{tpu_custom_call.1} parent=1 // pred_fallthru
      _
    // Predicated region
    $region14: #{tpu_custom_call.1} parent=1 // pred_check
      _
    $region15: #{tpu_custom_call.1} parent=1 // pred_check_branch
      %20 = sbr.rel (0) target = $region17
    $region16: #{tpu_custom_call.1} parent=1 // pred_region
      _
    $region17: #{tpu_custom_call.1} parent=1 // pred_fallthru
      _
    // Predicated region
    $region18: #{tpu_custom_call.1} parent=1 // pred_check
      _
    $region19: #{tpu_custom_call.1} parent=1 // pred_check_branch
      %22 = sbr.rel (0) target = $region21
    $region20: #{tpu_custom_call.1} parent=1 // pred_region
      _
    $region21: #{tpu_custom_call.1} parent=1 // pred_fallthru
      _
    // Predicated region
    $region22: #{tpu_custom_call.1} parent=1 // pred_check
      _
    $region23: #{tpu_custom_call.1} parent=1 // pred_check_branch
      %24 = sbr.rel (0) target = $region25
    $region24: #{tpu_custom_call.1} parent=1 // pred_region
      _
    $region25: #{tpu_custom_call.1} parent=1 // pred_fallthru
      _
    // Predicated region
    $region26: #{tpu_custom_call.1} parent=1 // pred_check
      _
    $region27: #{tpu_custom_call.1} parent=1 // pred_check_branch
      %26 = sbr.rel (0) target = $region29
    $region28: #{tpu_custom_call.1} parent=1 // pred_region
      _
    $region29: #{tpu_custom_call.1} parent=1 // pred_fallthru
      _
    %v28 = vld [vmem:[%s0] sm:$0xf]
    %v29 = vld [vmem:[%s0 + $0x4] sm:$0xf]
    %v30 = vld [vmem:[%s1] sm:$0xf]
    %v31 = vld [vmem:[%s1 + $0x4] sm:$0xf]
    %v32 = vld [vmem:[%s1 + $0x8] sm:$0xf]
    %v33 = vld [vmem:[%s1 + $0xc] sm:$0xf]
    %v34 = vld [vmem:[%s2] sm:$0x1]
    %v36 = vlaneseq
    %v37 = vshrl.u32 %v36, 7
    %v38 = vsub.s32 0, %v37
    %v39 = vrot.slane %v34, %v38
    %v43 = vunpack.c.l.b16 %v28
    %v44 = vunpack.c.l.b16 %v29
    %v45 = vpack.c.b16 %v44, %v43
    %v50 = vunpack.c.l.b16 %v30
    %v51 = vunpack.c.l.b16 %v31
    %v52 = vunpack.c.l.b16 %v32
    %v53 = vunpack.c.l.b16 %v33
    %v54 = vpack.c.b16 %v51, %v50
    %v55 = vpack.c.b16 %v53, %v52
    %vm58 = vcmask 261120
    %v60 = vsel %vm58, %v45, 0
    %62 = vmatprep.subr.bf16.mxu0 0
    %63 = vmatpush1.bf16.msra.mxu0 %v54
    %64 = vmatprep.subr.bf16.mxu0 0
    %65 = vmatpush1.bf16.msra.mxu0 %v55
    %66 = vmatprep.subr.bf16.mxu0 0
    %67 = vmatpush1.bf16.msra.mxu0 0
    %68 = vmatprep.subr.bf16.mxu0 0
    %69 = vmatpush1.bf16.msra.mxu0 0
    %70 = vmatprep.subr.bf16.mxu0 0
    %71 = vmatpush1.bf16.msra.mxu0 0
    %72 = vmatprep.subr.bf16.mxu0 0
    %73 = vmatpush1.bf16.msra.mxu0 0
    %74 = vmatprep.subr.bf16.mxu0 0
    %75 = vmatpush1.bf16.msra.mxu0 0
    %76 = vmatprep.subr.bf16.mxu0 0
    %77 = vmatpush1.bf16.msra.mxu0 0
    %78 = vmatprep.subr.bf16.mxu0 0
    %79 = vmatpush1.bf16.msra.mxu0 0
    %80 = vmatprep.subr.bf16.mxu0 0
    %81 = vmatpush1.bf16.msra.mxu0 0
    %82 = vmatprep.subr.bf16.mxu0 0
    %83 = vmatpush1.bf16.msra.mxu0 0
    %84 = vmatprep.subr.bf16.mxu0 0
    %85 = vmatpush1.bf16.msra.mxu0 0
    %86 = vmatprep.subr.bf16.mxu0 0
    %87 = vmatpush1.bf16.msra.mxu0 0
    %88 = vmatprep.subr.bf16.mxu0 0
    %89 = vmatpush1.bf16.msra.mxu0 0
    %90 = vmatprep.subr.bf16.mxu0 0
    %91 = vmatpush1.bf16.msra.mxu0 0
    %92 = vmatprep.subr.bf16.mxu0 0
    %93 = vmatpush1.bf16.msra.mxu0 0
    %94 = vmatprep.mubr.bf16.mxu0 0
    %95 = vmatmul.mubr.bf16.gmra.mrb[0].mxu0 %v60
    %v96 = vpop.f32.mrb[0].mxu0
    %v97 = vadd.f32 %v39, %v96
    %v98 = vpop.f32.mrb[0].mxu0
    %v99 = vpop.f32.mrb[0].mxu0
    %v100 = vadd.f32 %v39, %v99
    %v101 = vpop.f32.mrb[0].mxu0
    %102 = vdwg.mxu0
    %v103 = vmax.f32 %v97, 0.0
    %v104 = vmax.f32 %v100, 0.0
    %v105 = vpack.c.bf16 %v104, %v103
    %v106 = vld [vmem:[%s3] sm:$0xf]
    %v107 = vld [vmem:[%s3 + $0x4] sm:$0xf]
    %v108 = vld [vmem:[%s3 + $0x8] sm:$0xf]
    %v109 = vld [vmem:[%s3 + $0xc] sm:$0xf]
    %v110 = vld [vmem:[%s3 + $0x10] sm:$0xf]
    %v111 = vld [vmem:[%s3 + $0x14] sm:$0xf]
    %v112 = vld [vmem:[%s3 + $0x18] sm:$0xf]
    %v113 = vld [vmem:[%s3 + $0x1c] sm:$0xf]
    %v114 = vld [vmem:[%s4] sm:$0x1]
    %v116 = vlaneseq
    %v117 = vshrl.u32 %v116, 7
    %v118 = vsub.s32 0, %v117
    %v119 = vrot.slane %v114, %v118
    %v129 = vunpack.c.l.b16 %v106
    %v130 = vunpack.c.l.b16 %v107
    %v131 = vunpack.c.l.b16 %v108
    %v132 = vunpack.c.l.b16 %v109
    %v133 = vunpack.c.l.b16 %v110
    %v134 = vunpack.c.l.b16 %v111
    %v135 = vunpack.c.l.b16 %v112
    %v136 = vunpack.c.l.b16 %v113
    %v137 = vpack.c.b16 %v130, %v129
    %v138 = vpack.c.b16 %v132, %v131
    %v139 = vpack.c.b16 %v134, %v133
    %v140 = vpack.c.b16 %v136, %v135
    %vm145 = vcmask 523264
    %v147 = vsel %vm145, %v105, 0
    %149 = vmatprep.subr.bf16.mxu0 0
    %150 = vmatpush1.bf16.msra.mxu0 %v137
    %151 = vmatprep.subr.bf16.mxu0 0
    %152 = vmatpush1.bf16.msra.mxu0 %v138
    %153 = vmatprep.subr.bf16.mxu0 0
    %154 = vmatpush1.bf16.msra.mxu0 %v139
    %155 = vmatprep.subr.bf16.mxu0 0
    %156 = vmatpush1.bf16.msra.mxu0 %v140
    %157 = vmatprep.subr.bf16.mxu0 0
    %158 = vmatpush1.bf16.msra.mxu0 0
    %159 = vmatprep.subr.bf16.mxu0 0
    %160 = vmatpush1.bf16.msra.mxu0 0
    %161 = vmatprep.subr.bf16.mxu0 0
    %162 = vmatpush1.bf16.msra.mxu0 0
    %163 = vmatprep.subr.bf16.mxu0 0
    %164 = vmatpush1.bf16.msra.mxu0 0
    %165 = vmatprep.subr.bf16.mxu0 0
    %166 = vmatpush1.bf16.msra.mxu0 0
    %167 = vmatprep.subr.bf16.mxu0 0
    %168 = vmatpush1.bf16.msra.mxu0 0
    %169 = vmatprep.subr.bf16.mxu0 0
    %170 = vmatpush1.bf16.msra.mxu0 0
    %171 = vmatprep.subr.bf16.mxu0 0
    %172 = vmatpush1.bf16.msra.mxu0 0
    %173 = vmatprep.subr.bf16.mxu0 0
    %174 = vmatpush1.bf16.msra.mxu0 0
    %175 = vmatprep.subr.bf16.mxu0 0
    %176 = vmatpush1.bf16.msra.mxu0 0
    %177 = vmatprep.subr.bf16.mxu0 0
    %178 = vmatpush1.bf16.msra.mxu0 0
    %179 = vmatprep.subr.bf16.mxu0 0
    %180 = vmatpush1.bf16.msra.mxu0 0
    %181 = vmatprep.mubr.bf16.mxu0 0
    %182 = vmatmul.mubr.bf16.gmra.mrb[0].mxu0 %v147
    %v183 = vpop.f32.mrb[0].mxu0
    %v184 = vadd.f32 %v119, %v183
    %v185 = vpop.f32.mrb[0].mxu0
    %v186 = vpop.f32.mrb[0].mxu0
    %v187 = vadd.f32 %v119, %v186
    %v188 = vpop.f32.mrb[0].mxu0
    %189 = vdwg.mxu0
    %v190 = vmax.f32 %v184, 0.0
    %v191 = vmax.f32 %v187, 0.0
    %v192 = vpack.c.bf16 %v191, %v190
    %v193 = vld [vmem:[%s5] sm:$0xf]
    %v194 = vld [vmem:[%s5 + $0x4] sm:$0xf]
    %v195 = vld [vmem:[%s5 + $0x8] sm:$0xf]
    %v196 = vld [vmem:[%s5 + $0xc] sm:$0xf]
    %v197 = vld [vmem:[%s6] sm:$0x1]
    %v199 = vlaneseq
    %v200 = vshrl.u32 %v199, 7
    %v201 = vsub.s32 0, %v200
    %v202 = vrot.slane %v197, %v201
    %v208 = vunpack.c.l.b16 %v193
    %v209 = vunpack.c.l.b16 %v194
    %v210 = vunpack.c.l.b16 %v195
    %v211 = vunpack.c.l.b16 %v196
    %v212 = vpack.c.b16 %v209, %v208
    %v213 = vpack.c.b16 %v211, %v210
    %v217 = vsel %vm58, %v192, 0
    %219 = vmatprep.subr.bf16.mxu0 0
    %220 = vmatpush1.bf16.msra.mxu0 %v212
    %221 = vmatprep.subr.bf16.mxu0 0
    %222 = vmatpush1.bf16.msra.mxu0 %v213
    %223 = vmatprep.subr.bf16.mxu0 0
    %224 = vmatpush1.bf16.msra.mxu0 0
    %225 = vmatprep.subr.bf16.mxu0 0
    %226 = vmatpush1.bf16.msra.mxu0 0
    %227 = vmatprep.subr.bf16.mxu0 0
    %228 = vmatpush1.bf16.msra.mxu0 0
    %229 = vmatprep.subr.bf16.mxu0 0
    %230 = vmatpush1.bf16.msra.mxu0 0
    %231 = vmatprep.subr.bf16.mxu0 0
    %232 = vmatpush1.bf16.msra.mxu0 0
    %233 = vmatprep.subr.bf16.mxu0 0
    %234 = vmatpush1.bf16.msra.mxu0 0
    %235 = vmatprep.subr.bf16.mxu0 0
    %236 = vmatpush1.bf16.msra.mxu0 0
    %237 = vmatprep.subr.bf16.mxu0 0
    %238 = vmatpush1.bf16.msra.mxu0 0
    %239 = vmatprep.subr.bf16.mxu0 0
    %240 = vmatpush1.bf16.msra.mxu0 0
    %241 = vmatprep.subr.bf16.mxu0 0
    %242 = vmatpush1.bf16.msra.mxu0 0
    %243 = vmatprep.subr.bf16.mxu0 0
    %244 = vmatpush1.bf16.msra.mxu0 0
    %245 = vmatprep.subr.bf16.mxu0 0
    %246 = vmatpush1.bf16.msra.mxu0 0
    %247 = vmatprep.subr.bf16.mxu0 0
    %248 = vmatpush1.bf16.msra.mxu0 0
    %249 = vmatprep.subr.bf16.mxu0 0
    %250 = vmatpush1.bf16.msra.mxu0 0
    %251 = vmatprep.mubr.bf16.mxu0 0
    %252 = vmatmul.mubr.bf16.gmra.mrb[0].mxu0 %v217
    %v253 = vpop.f32.mrb[0].mxu0
    %v254 = vadd.f32 %v202, %v253
    %v255 = vpop.f32.mrb[0].mxu0
    %v256 = vpop.f32.mrb[0].mxu0
    %v257 = vadd.f32 %v202, %v256
    %v258 = vpop.f32.mrb[0].mxu0
    %259 = vdwg.mxu0
    %v260 = vsub.f32 0.0, %v254
    %v261 = vsub.f32 0.0, %v257
    %v262 = vmul.f32 %v260, 1.442695
    %v263 = vpow.pop %v262
    %v264 = vmul.f32 %v261, 1.442695
    %v265 = vpow.pop %v264
    %v266 = vadd.f32 %v263, 1.0
    %v267 = vadd.f32 %v265, 1.0
    %v268 = vrcp.pop %v266
    %v269 = vrcp.pop %v267
    %v270 = vpack.c.bf16 %v269, %v268
    %v272 = vunpack.c.l.b16 %v270
    %v273 = vunpack.c.h.b16 %v270
    %v274 = vpack.c.b16 %v272, %v272
    %v275 = vpack.c.b16 %v273, %v273
    %278 = vst [vmem:[#allocation2] sm:$0xf] %v274
    %279 = vst [vmem:[#allocation2 + $0x4] sm:$0xf] %v275
    // Predicated region
    $region30: #{tpu_custom_call.1} parent=1 // pred_check
      _
    $region31: #{tpu_custom_call.1} parent=1 // pred_check_branch
      %281 = sbr.rel (0) target = $region33
    $region32: #{tpu_custom_call.1} parent=1 // pred_region
      %s283 = ssub.s32 128, 128
      %284 = vsyncadd [#allocation3], %s283
      %s285 = sshll.u32 [#allocation2], 4
      %s286 = int_to_ptr.vmem [resolvable:$true] %s285
      %291 = dma.vmem_to_hbm [thread:$0]  %s286, 128, %s7, [#allocation3], 64, 64, 4
    $region33: #{tpu_custom_call.1} parent=1 // pred_fallthru
      _
    // Predicated region
    $region34: #{tpu_custom_call.1} parent=1 // pred_check
      _
    $region35: #{tpu_custom_call.1} parent=1 // pred_check_branch
      %293 = sbr.rel (0) target = $region37
    $region36: #{tpu_custom_call.1} parent=1 // pred_region
      %294 = dma.done [#allocation3], 128
    $region37: #{tpu_custom_call.1} parent=1 // pred_fallthru
      _
    %295 = vsyncpa [#allocation3], 1

</llo_original>
